<compile_context>
chip_gen: v6e
topology: v6e:2x2x1
jax: 0.10.0
libtpu: 0.0.40
codegen_flags: <defaults>
</compile_context>

<pallas_src>
import jax
import jax.numpy as jnp
from jax.experimental import pallas as pl
from jax.experimental.pallas import tpu as pltpu


def concat_flat_kernel(x1_ref, x2_ref, x3_ref, x4_ref, x5_ref, o_ref):
    """Concatenate five flattened (TB, F_i) tiles into one (TB, F_total) tile.

    The concatenation is done in-register and written with ONE full-width
    store, keeping the output store lane-dense (single masked boundary at the
    row end rather than five masked sub-128 stores).
    """
    o_ref[...] = jnp.concatenate(
        [x1_ref[...], x2_ref[...], x3_ref[...], x4_ref[...], x5_ref[...]],
        axis=-1,
    )


# Sublane packing per itemsize: f32 -> 8 rows/vreg, bf16 -> 16, int8 -> 32.
_SUBLANE_BY_ITEMSIZE = {1: 32, 2: 16, 4: 8, 8: 8}


def shape_module_forward(x1, x2, x3, x4, x5, adjust_dim=True, concat=True,
                         min_pallas_bytes=256 * 1024, block_rows=None):
    """Pallas implementation of ShapeModule.forward."""
    xs = (x1, x2, x3, x4, x5)
    if adjust_dim:
        # unsqueeze(1): pure metadata, no data movement.
        xs = tuple(jnp.expand_dims(x, 1) for x in xs)
    if not concat:
        return xs

    batch = xs[0].shape[0]
    if any(x.shape[0] != batch for x in xs):
        raise ValueError(
            f"All inputs must share the batch dim; got "
            f"{[x.shape[0] for x in xs]}")

    # Match torch.cat / jnp.concatenate type-promotion semantics.
    out_dtype = jnp.result_type(*(x.dtype for x in xs))
    # view(B, -1): contiguous row-major flatten, metadata-only in XLA.
    flats = tuple(x.reshape(batch, -1).astype(out_dtype) for x in xs)
    f_sizes = tuple(f.shape[1] for f in flats)
    f_total = sum(f_sizes)
    itemsize = jnp.dtype(out_dtype).itemsize

    # Total HBM traffic (read every slab once + write the concat once).
    total_bytes = 2 * batch * f_total * itemsize

    # Tiny inputs: the pallas_call dispatch overhead and the fusion barrier
    # dwarf the copy — let XLA fuse/eliminate the concat instead.
    if total_bytes < 2 * min_pallas_bytes:
        return jnp.concatenate(flats, axis=1).reshape(batch, 1, f_total)

    # --- Batch-tile sizing (generation-safe) -------------------------------
    sublane = _SUBLANE_BY_ITEMSIZE.get(itemsize, 8)
    if block_rows is None:
        # Double-buffered inputs + output working set ~= 4 * F_total * TB * itemsize.
        vmem_budget = 8 * 1024 * 1024  # leaves large headroom on v5e/v6e/v7x
        tb = vmem_budget // max(1, 4 * f_total * itemsize)
        tb = max(sublane, (tb // sublane) * sublane)
        tb = min(tb, 1024)
    else:
        tb = max(sublane, (int(block_rows) // sublane) * sublane)
    # Never allocate tiles taller than the (sublane-rounded) batch.
    tb = min(tb, ((batch + sublane - 1) // sublane) * sublane)

    grid = (pl.cdiv(batch, tb),)

    out2d = pl.pallas_call(
        concat_flat_kernel,
        out_shape=jax.ShapeDtypeStruct((batch, f_total), out_dtype),
        grid=grid,
        in_specs=[pl.BlockSpec((tb, f), lambda i: (i, 0)) for f in f_sizes],
        out_specs=pl.BlockSpec((tb, f_total), lambda i: (i, 0)),
        compiler_params=pltpu.CompilerParams(
            dimension_semantics=("parallel",),   # shards batch across TCs on v7x
            vmem_limit_bytes=32 * 1024 * 1024,   # fits v5e/v6e/v7x scoped VMEM
        ),
        cost_estimate=pl.CostEstimate(
            flops=0, transcendentals=0, bytes_accessed=total_bytes),
    )(*flats)

    # output.reshape(B, 1, -1): metadata-only.
    return out2d.reshape(batch, 1, f_total)


def ref_forward(x1, x2, x3, x4, x5, adjust_dim=True, concat=True):
    """Pure-JAX reference (mirrors the PyTorch module) for correctness check."""
    xs = (x1, x2, x3, x4, x5)
    if adjust_dim:
        xs = tuple(jnp.expand_dims(x, 1) for x in xs)
    if not concat:
        return xs
    batch = xs[0].shape[0]
    flats = [x.reshape(batch, -1) for x in xs]
    out = jnp.concatenate(flats, axis=1)
    return out.reshape(batch, 1, -1)


if __name__ == "__main__":
    key = jax.random.PRNGKey(0)
    k1, k2, k3, k4, k5 = jax.random.split(key, 5)

    # ---- Small shapes (module-typical): exercises the fast fallback path ----
    batch = 2
    x1 = jax.random.normal(k1, (batch, 16), dtype=jnp.float32)
    x2 = jax.random.normal(k2, (batch, 8), dtype=jnp.float32)
    x3 = jax.random.normal(k3, (batch, 4, 4), dtype=jnp.float32)
    x4 = jax.random.normal(k4, (batch, 2, 8), dtype=jnp.float32)
    x5 = jax.random.normal(k5, (batch, 32), dtype=jnp.float32)

    out = jax.block_until_ready(shape_module_forward(x1, x2, x3, x4, x5))
    ref = jax.block_until_ready(ref_forward(x1, x2, x3, x4, x5))
    f_total = 16 + 8 + 16 + 16 + 32
    assert out.shape == (batch, 1, f_total), out.shape
    assert jnp.array_equal(out, ref), (
        f"max abs err {jnp.max(jnp.abs(out - ref))}")

    # ---- Forced Pallas path: multi-step grid with a partial last block ----
    batch2 = 20  # not a multiple of block_rows=8 -> exercises block clipping
    y1 = jax.random.normal(k1, (batch2, 16), dtype=jnp.float32)
    y2 = jax.random.normal(k2, (batch2, 8), dtype=jnp.float32)
    y3 = jax.random.normal(k3, (batch2, 4, 4), dtype=jnp.float32)
    y4 = jax.random.normal(k4, (batch2, 2, 8), dtype=jnp.float32)
    y5 = jax.random.normal(k5, (batch2, 32), dtype=jnp.float32)

    out2 = jax.block_until_ready(
        shape_module_forward(y1, y2, y3, y4, y5,
                             min_pallas_bytes=0, block_rows=8))
    ref2 = jax.block_until_ready(ref_forward(y1, y2, y3, y4, y5))
    assert out2.shape == (batch2, 1, f_total), out2.shape
    assert jnp.array_equal(out2, ref2), (
        f"max abs err {jnp.max(jnp.abs(out2 - ref2))}")

    # ---- concat=False path (tuple of unsqueezed tensors; identity data-wise) ----
    t = shape_module_forward(x1, x2, x3, x4, x5, concat=False)
    assert t[0].shape == (batch, 1, 16) and t[2].shape == (batch, 1, 4, 4)

    print("KERNEL_OK")
</pallas_src>

<mosaic_0001>
module attributes {stable_mosaic.version = 11 : i64} {
  func.func @concat_flat_kernel(%arg0: i32, %arg1: memref<8x16xf32, #tpu.memory_space<vmem>>, %arg2: memref<8x8xf32, #tpu.memory_space<vmem>>, %arg3: memref<8x16xf32, #tpu.memory_space<vmem>>, %arg4: memref<8x16xf32, #tpu.memory_space<vmem>>, %arg5: memref<8x32xf32, #tpu.memory_space<vmem>>, %arg6: memref<8x88xf32, #tpu.memory_space<vmem>>) attributes {dimension_semantics = [#tpu.dimension_semantics<parallel>], iteration_bounds = array<i64: 3>, scalar_prefetch = 0 : i64, scratch_operands = 0 : i64, tpu.core_type = #tpu.core_type<tc>, window_params = [{transform_indices = @transform_0, window_bounds = array<i64: 8, 16>}, {transform_indices = @transform_1, window_bounds = array<i64: 8, 8>}, {transform_indices = @transform_2, window_bounds = array<i64: 8, 16>}, {transform_indices = @transform_3, window_bounds = array<i64: 8, 16>}, {transform_indices = @transform_4, window_bounds = array<i64: 8, 32>}, {transform_indices = @transform_5, window_bounds = array<i64: 8, 88>}]} {
    %c0 = arith.constant 0 : index
    %c0_0 = arith.constant 0 : index
    %0 = vector.load %arg1[%c0, %c0_0] : memref<8x16xf32, #tpu.memory_space<vmem>>, vector<8x16xf32>
    %c0_1 = arith.constant 0 : index
    %c0_2 = arith.constant 0 : index
    %1 = vector.load %arg2[%c0_1, %c0_2] : memref<8x8xf32, #tpu.memory_space<vmem>>, vector<8x8xf32>
    %c0_3 = arith.constant 0 : index
    %c0_4 = arith.constant 0 : index
    %2 = vector.load %arg3[%c0_3, %c0_4] : memref<8x16xf32, #tpu.memory_space<vmem>>, vector<8x16xf32>
    %c0_5 = arith.constant 0 : index
    %c0_6 = arith.constant 0 : index
    %3 = vector.load %arg4[%c0_5, %c0_6] : memref<8x16xf32, #tpu.memory_space<vmem>>, vector<8x16xf32>
    %c0_7 = arith.constant 0 : index
    %c0_8 = arith.constant 0 : index
    %4 = vector.load %arg5[%c0_7, %c0_8] : memref<8x32xf32, #tpu.memory_space<vmem>>, vector<8x32xf32>
    %5 = tpu.concatenate %0, %1, %2, %3, %4 in 1 : vector<8x16xf32>, vector<8x8xf32>, vector<8x16xf32>, vector<8x16xf32>, vector<8x32xf32> -> vector<8x88xf32>
    %c0_9 = arith.constant 0 : index
    %c0_10 = arith.constant 0 : index
    %6 = vector.load %arg6[%c0_9, %c0_10] : memref<8x88xf32, #tpu.memory_space<vmem>>, vector<8x88xf32>
    tpu.vector_store %arg6[%c0_9, %c0_10], %5 {strides = array<i32>} : memref<8x88xf32, #tpu.memory_space<vmem>>, vector<8x88xf32>,
    return
  }
  func.func @transform_0(%arg0: i32) -> (i32, i32) {
    %c0_i32 = arith.constant 0 : i32
    %c0_i32_0 = arith.constant 0 : i32
    return %arg0, %c0_i32 : i32, i32
  }
  func.func @transform_1(%arg0: i32) -> (i32, i32) {
    %c0_i32 = arith.constant 0 : i32
    %c0_i32_0 = arith.constant 0 : i32
    return %arg0, %c0_i32 : i32, i32
  }
  func.func @transform_2(%arg0: i32) -> (i32, i32) {
    %c0_i32 = arith.constant 0 : i32
    %c0_i32_0 = arith.constant 0 : i32
    return %arg0, %c0_i32 : i32, i32
  }
  func.func @transform_3(%arg0: i32) -> (i32, i32) {
    %c0_i32 = arith.constant 0 : i32
    %c0_i32_0 = arith.constant 0 : i32
    return %arg0, %c0_i32 : i32, i32
  }
  func.func @transform_4(%arg0: i32) -> (i32, i32) {
    %c0_i32 = arith.constant 0 : i32
    %c0_i32_0 = arith.constant 0 : i32
    return %arg0, %c0_i32 : i32, i32
  }
  func.func @transform_5(%arg0: i32) -> (i32, i32) {
    %c0_i32 = arith.constant 0 : i32
    %c0_i32_0 = arith.constant 0 : i32
    return %arg0, %c0_i32 : i32, i32
  }
}

</mosaic_0001>

<llo_original>
// kernel: tpu_custom_call.1
$region0: #{tpu_custom_call.1}
  #allocation0 [shape = 'u32[]', space=smem, size = 0x4, offset = 0x4, fixed_abs, tag = 'smem constant byte address 0x4 - core index']
  #allocation1 [shape = 'u32[144,128]{1,0:T(1,128)}', space=vmem, size = 0x12000, scoped, tag = 'internal scratch']
  %s0 = inlined_call_operand.vmem [shape: f32[20,16], index: 0, kind: input, shape index: {}]
  %s1 = inlined_call_operand.vmem [shape: f32[20,8], index: 1, kind: input, shape index: {}]
  %s2 = inlined_call_operand.vmem [shape: f32[20,16], index: 2, kind: input, shape index: {}]
  %s3 = inlined_call_operand.vmem [shape: f32[20,16], index: 3, kind: input, shape index: {}]
  %s4 = inlined_call_operand.vmem [shape: f32[20,32], index: 4, kind: input, shape index: {}]
  %s5 = inlined_call_operand.hbm [shape: f32[20,88], index: 5, kind: output, shape index: {}]
  %s6 = sld [smem:[#allocation0]]
  $region53: #{tpu_custom_call.1} parent=0
    _
  %s8 = ssub.s32 1, %s6
  %s9 = scalar_select 0, %s8, %s6
  $region1: #{tpu_custom_call.1} parent=0
    #allocation2 [shape = 'u8[8192]{0}', space=vmem, size = 0x2000, scoped, tag = 'output window, operand 0']
    #allocation3 [shape = 's32[2]{0}', space=sflag, size = 0x8, scoped, tag = 'scoped memory for tpu_custom_call.1']
    %10 = vsyncpa [#allocation3], 0
    %s11 = scalar_lea.sflag [#allocation3], 1
    %12 = vsyncpa %s11, 0
    loop: start=0, step=1, limit=5
    $region2: #{tpu_custom_call.1} parent=1 // loop_pre_header
      _
    $region3: #{tpu_custom_call.1} parent=1 // loop_header
      %s14 = sphi 0, %s18
      %p15 = scmp.ge.s32.totalorder %s14, 5
      %s24 = sphi 0, %s26
      %s27 = sphi 0, %s24
      %s28 = sphi 0, %s27
      %s44 = sphi 0, %s28
      %s50 = sphi 0, %s52
      %s53 = sphi 0, %s50
      %s54 = sphi 0, %s53
      %s70 = sphi 0, %s54
      %s76 = sphi 0, %s78
      %s79 = sphi 0, %s76
      %s80 = sphi 0, %s79
      %s96 = sphi 0, %s80
      %s102 = sphi 0, %s104
      %s105 = sphi 0, %s102
      %s106 = sphi 0, %s105
      %s122 = sphi 0, %s106
      %s128 = sphi 0, %s130
      %s131 = sphi 0, %s128
      %s132 = sphi 0, %s131
      %s148 = sphi 0, %s132
      %s154 = sphi 0, %s156
      %s157 = sphi 0, %s154
      %s158 = sphi 0, %s157
      %s174 = sphi 0, %s158
    $region4: #{tpu_custom_call.1} parent=1 // loop_header_branch
      %17 = sbr.rel (%p15) target = $region8
    $region5: #{tpu_custom_call.1} parent=1 // loop_body
      %s19 = ssub.s32 %s14, 1
      %s20 = ssub.s32 %s14, 2
      %s21 = sadd.s32 %s14, 1
      %s22 = ssub.s32 %s14, %s21
      %p23 = scmp.eq.s32.totalorder %s22, 0
      %s25 = sadd.s32 %s24, 1
      %s26 = scalar_select %p23, %s24, %s25
      %p29 = pneg %p23
      %p30 = scmp.eq.s32.totalorder %s14, 2
      %p31 = por %p29, %p30
      %p32 = scmp.ne.s32.totalorder %s24, %s27
      %p33 = scmp.eq.s32.totalorder %s14, 0
      %p34 = por %p32, %p33
      %p35 = scmp.ne.s32.totalorder %s24, %s27
      %p36 = scmp.eq.s32.totalorder %s19, 2
      %p37 = por %p35, %p36
      %p38 = scmp.ne.s32.totalorder %s27, %s28
      %p39 = scmp.eq.s32.totalorder %s19, 0
      %p40 = por %p38, %p39
      %p41 = scmp.ne.s32.totalorder %s27, %s28
      %p42 = scmp.eq.s32.totalorder %s20, 2
      %p43 = por %p41, %p42
      %p45 = scmp.ne.s32.totalorder %s28, %s44
      %p46 = scmp.eq.s32.totalorder %s20, 0
      %p47 = por %p45, %p46
      %s48 = ssub.s32 %s14, %s21
      %p49 = scmp.eq.s32.totalorder %s48, 0
      %s51 = sadd.s32 %s50, 1
      %s52 = scalar_select %p49, %s50, %s51
      %p55 = pneg %p49
      %p56 = scmp.eq.s32.totalorder %s14, 2
      %p57 = por %p55, %p56
      %p58 = scmp.ne.s32.totalorder %s50, %s53
      %p59 = scmp.eq.s32.totalorder %s14, 0
      %p60 = por %p58, %p59
      %p61 = scmp.ne.s32.totalorder %s50, %s53
      %p62 = scmp.eq.s32.totalorder %s19, 2
      %p63 = por %p61, %p62
      %p64 = scmp.ne.s32.totalorder %s53, %s54
      %p65 = scmp.eq.s32.totalorder %s19, 0
      %p66 = por %p64, %p65
      %p67 = scmp.ne.s32.totalorder %s53, %s54
      %p68 = scmp.eq.s32.totalorder %s20, 2
      %p69 = por %p67, %p68
      %p71 = scmp.ne.s32.totalorder %s54, %s70
      %p72 = scmp.eq.s32.totalorder %s20, 0
      %p73 = por %p71, %p72
      %s74 = ssub.s32 %s14, %s21
      %p75 = scmp.eq.s32.totalorder %s74, 0
      %s77 = sadd.s32 %s76, 1
      %s78 = scalar_select %p75, %s76, %s77
      %p81 = pneg %p75
      %p82 = scmp.eq.s32.totalorder %s14, 2
      %p83 = por %p81, %p82
      %p84 = scmp.ne.s32.totalorder %s76, %s79
      %p85 = scmp.eq.s32.totalorder %s14, 0
      %p86 = por %p84, %p85
      %p87 = scmp.ne.s32.totalorder %s76, %s79
      %p88 = scmp.eq.s32.totalorder %s19, 2
      %p89 = por %p87, %p88
      %p90 = scmp.ne.s32.totalorder %s79, %s80
      %p91 = scmp.eq.s32.totalorder %s19, 0
      %p92 = por %p90, %p91
      %p93 = scmp.ne.s32.totalorder %s79, %s80
      %p94 = scmp.eq.s32.totalorder %s20, 2
      %p95 = por %p93, %p94
      %p97 = scmp.ne.s32.totalorder %s80, %s96
      %p98 = scmp.eq.s32.totalorder %s20, 0
      %p99 = por %p97, %p98
      %s100 = ssub.s32 %s14, %s21
      %p101 = scmp.eq.s32.totalorder %s100, 0
      %s103 = sadd.s32 %s102, 1
      %s104 = scalar_select %p101, %s102, %s103
      %p107 = pneg %p101
      %p108 = scmp.eq.s32.totalorder %s14, 2
      %p109 = por %p107, %p108
      %p110 = scmp.ne.s32.totalorder %s102, %s105
      %p111 = scmp.eq.s32.totalorder %s14, 0
      %p112 = por %p110, %p111
      %p113 = scmp.ne.s32.totalorder %s102, %s105
      %p114 = scmp.eq.s32.totalorder %s19, 2
      %p115 = por %p113, %p114
      %p116 = scmp.ne.s32.totalorder %s105, %s106
      %p117 = scmp.eq.s32.totalorder %s19, 0
      %p118 = por %p116, %p117
      %p119 = scmp.ne.s32.totalorder %s105, %s106
      %p120 = scmp.eq.s32.totalorder %s20, 2
      %p121 = por %p119, %p120
      %p123 = scmp.ne.s32.totalorder %s106, %s122
      %p124 = scmp.eq.s32.totalorder %s20, 0
      %p125 = por %p123, %p124
      %s126 = ssub.s32 %s14, %s21
      %p127 = scmp.eq.s32.totalorder %s126, 0
      %s129 = sadd.s32 %s128, 1
      %s130 = scalar_select %p127, %s128, %s129
      %p133 = pneg %p127
      %p134 = scmp.eq.s32.totalorder %s14, 2
      %p135 = por %p133, %p134
      %p136 = scmp.ne.s32.totalorder %s128, %s131
      %p137 = scmp.eq.s32.totalorder %s14, 0
      %p138 = por %p136, %p137
      %p139 = scmp.ne.s32.totalorder %s128, %s131
      %p140 = scmp.eq.s32.totalorder %s19, 2
      %p141 = por %p139, %p140
      %p142 = scmp.ne.s32.totalorder %s131, %s132
      %p143 = scmp.eq.s32.totalorder %s19, 0
      %p144 = por %p142, %p143
      %p145 = scmp.ne.s32.totalorder %s131, %s132
      %p146 = scmp.eq.s32.totalorder %s20, 2
      %p147 = por %p145, %p146
      %p149 = scmp.ne.s32.totalorder %s132, %s148
      %p150 = scmp.eq.s32.totalorder %s20, 0
      %p151 = por %p149, %p150
      %s152 = ssub.s32 %s14, %s21
      %p153 = scmp.eq.s32.totalorder %s152, 0
      %s155 = sadd.s32 %s154, 1
      %s156 = scalar_select %p153, %s154, %s155
      %p159 = pneg %p153
      %p160 = scmp.eq.s32.totalorder %s14, 2
      %p161 = por %p159, %p160
      %p162 = scmp.ne.s32.totalorder %s154, %s157
      %p163 = scmp.eq.s32.totalorder %s14, 0
      %p164 = por %p162, %p163
      %p165 = scmp.ne.s32.totalorder %s154, %s157
      %p166 = scmp.eq.s32.totalorder %s19, 2
      %p167 = por %p165, %p166
      %p168 = scmp.ne.s32.totalorder %s157, %s158
      %p169 = scmp.eq.s32.totalorder %s19, 0
      %p170 = por %p168, %p169
      %p171 = scmp.ne.s32.totalorder %s157, %s158
      %p172 = scmp.eq.s32.totalorder %s20, 2
      %p173 = por %p171, %p172
      %p175 = scmp.ne.s32.totalorder %s158, %s174
      %p176 = scmp.eq.s32.totalorder %s20, 0
      %p177 = por %p175, %p176
      %p178 = scmp.le.s32.totalorder 1, %s14
      %p179 = scmp.lt.s32.totalorder %s14, 4
      %p180 = pnand %p178, %p179
      %p181 = pneg %p180
      // Predicated region
      $region9: #{tpu_custom_call.1} parent=5 // pred_check
        _
      $region10: #{tpu_custom_call.1} parent=5 // pred_check_branch
        %183 = sbr.rel (%p180) target = $region12
      $region11: #{tpu_custom_call.1} parent=5 // pred_region
        %s184 = ssub.s32 %s14, 1
      $region12: #{tpu_custom_call.1} parent=5 // pred_fallthru
        _
      %p185 = scmp.lt.s32.totalorder %s14, 3
      // Predicated region
      $region13: #{tpu_custom_call.1} parent=5 // pred_check
        %p186 = pneg %p185
      $region14: #{tpu_custom_call.1} parent=5 // pred_check_branch
        %188 = sbr.rel (%p186) target = $region16
      $region15: #{tpu_custom_call.1} parent=5 // pred_region
        // Predicated region
        $region17: #{tpu_custom_call.1} parent=15 // pred_check
          %p189 = pneg %p34
        $region18: #{tpu_custom_call.1} parent=15 // pred_check_branch
          %191 = sbr.rel (%p189) target = $region20
        $region19: #{tpu_custom_call.1} parent=15 // pred_region
          %p192 = scmp.lt.s32.totalorder %s14, 2
          %s193 = scalar_select %p192, %s14, 2
          %s194 = smul.addr %s193, 8
          %s195 = scalar_lea.vmem %s0, %s194
        $region20: #{tpu_custom_call.1} parent=15 // pred_fallthru
          _
        // Predicated region
        $region21: #{tpu_custom_call.1} parent=15 // pred_check
          %p196 = pneg %p60
        $region22: #{tpu_custom_call.1} parent=15 // pred_check_branch
          %198 = sbr.rel (%p196) target = $region24
        $region23: #{tpu_custom_call.1} parent=15 // pred_region
          %p199 = scmp.lt.s32.totalorder %s14, 2
          %s200 = scalar_select %p199, %s14, 2
          %s201 = smul.addr %s200, 8
          %s202 = scalar_lea.vmem %s1, %s201
        $region24: #{tpu_custom_call.1} parent=15 // pred_fallthru
          _
        // Predicated region
        $region25: #{tpu_custom_call.1} parent=15 // pred_check
          %p203 = pneg %p86
        $region26: #{tpu_custom_call.1} parent=15 // pred_check_branch
          %205 = sbr.rel (%p203) target = $region28
        $region27: #{tpu_custom_call.1} parent=15 // pred_region
          %p206 = scmp.lt.s32.totalorder %s14, 2
          %s207 = scalar_select %p206, %s14, 2
          %s208 = smul.addr %s207, 8
          %s209 = scalar_lea.vmem %s2, %s208
        $region28: #{tpu_custom_call.1} parent=15 // pred_fallthru
          _
        // Predicated region
        $region29: #{tpu_custom_call.1} parent=15 // pred_check
          %p210 = pneg %p112
        $region30: #{tpu_custom_call.1} parent=15 // pred_check_branch
          %212 = sbr.rel (%p210) target = $region32
        $region31: #{tpu_custom_call.1} parent=15 // pred_region
          %p213 = scmp.lt.s32.totalorder %s14, 2
          %s214 = scalar_select %p213, %s14, 2
          %s215 = smul.addr %s214, 8
          %s216 = scalar_lea.vmem %s3, %s215
        $region32: #{tpu_custom_call.1} parent=15 // pred_fallthru
          _
        // Predicated region
        $region33: #{tpu_custom_call.1} parent=15 // pred_check
          %p217 = pneg %p138
        $region34: #{tpu_custom_call.1} parent=15 // pred_check_branch
          %219 = sbr.rel (%p217) target = $region36
        $region35: #{tpu_custom_call.1} parent=15 // pred_region
          %p220 = scmp.lt.s32.totalorder %s14, 2
          %s221 = scalar_select %p220, %s14, 2
          %s222 = smul.addr %s221, 8
          %s223 = scalar_lea.vmem %s4, %s222
        $region36: #{tpu_custom_call.1} parent=15 // pred_fallthru
          _
      $region16: #{tpu_custom_call.1} parent=5 // pred_fallthru
        _
      %p224 = scmp.le.s32.totalorder 1, %s14
      %p225 = scmp.lt.s32.totalorder %s14, 4
      %p226 = pnand %p224, %p225
      %p227 = pneg %p226
      // Predicated region
      $region37: #{tpu_custom_call.1} parent=5 // pred_check
        _
      $region38: #{tpu_custom_call.1} parent=5 // pred_check_branch
        %229 = sbr.rel (%p226) target = $region40
      $region39: #{tpu_custom_call.1} parent=5 // pred_region
        %s230 = ssub.s32 %s14, 1
        %p231 = scmp.lt.s32.totalorder %s19, 2
        %s232 = scalar_select %p231, %s19, 2
        %s233 = smul.addr %s232, 8
        %s234 = scalar_lea.vmem %s0, %s233
        %p235 = pneg %p40
        %p236 = pneg %p37
        %p237 = scmp.lt.s32.totalorder %s19, 2
        %s238 = scalar_select %p237, %s19, 2
        %s239 = smul.addr %s238, 8
        %s240 = scalar_lea.vmem %s1, %s239
        %p241 = pneg %p66
        %p242 = pneg %p63
        %p243 = scmp.lt.s32.totalorder %s19, 2
        %s244 = scalar_select %p243, %s19, 2
        %s245 = smul.addr %s244, 8
        %s246 = scalar_lea.vmem %s2, %s245
        %p247 = pneg %p92
        %p248 = pneg %p89
        %p249 = scmp.lt.s32.totalorder %s19, 2
        %s250 = scalar_select %p249, %s19, 2
        %s251 = smul.addr %s250, 8
        %s252 = scalar_lea.vmem %s3, %s251
        %p253 = pneg %p118
        %p254 = pneg %p115
        %p255 = scmp.lt.s32.totalorder %s19, 2
        %s256 = scalar_select %p255, %s19, 2
        %s257 = smul.addr %s256, 8
        %s258 = scalar_lea.vmem %s4, %s257
        %p259 = pneg %p144
        %p260 = pneg %p141
        %p261 = pneg %p170
        %p262 = pneg %p167
        %s263 = sand.u32 %s157, 1
        %s264 = scalar_lea.sflag [#allocation3], %s263
        %s265 = sand.u32 %s157, 1
        %s266 = smul.addr %s265, 8
        %s267 = scalar_lea.vmem [#allocation2], %s266
        %p268 = scmp.lt.s32.totalorder %s19, 2
        %s269 = scalar_select %p268, %s19, 2
        %s270 = smul.addr %s269, 8
        %s271 = scalar_lea.vmem %s0, %s270
        %p272 = scmp.lt.s32.totalorder %s19, 2
        %s273 = scalar_select %p272, %s19, 2
        %s274 = smul.addr %s273, 8
        %s275 = scalar_lea.vmem %s1, %s274
        %p276 = scmp.lt.s32.totalorder %s19, 2
        %s277 = scalar_select %p276, %s19, 2
        %s278 = smul.addr %s277, 8
        %s279 = scalar_lea.vmem %s2, %s278
        %p280 = scmp.lt.s32.totalorder %s19, 2
        %s281 = scalar_select %p280, %s19, 2
        %s282 = smul.addr %s281, 8
        %s283 = scalar_lea.vmem %s3, %s282
        %p284 = scmp.lt.s32.totalorder %s19, 2
        %s285 = scalar_select %p284, %s19, 2
        %s286 = smul.addr %s285, 8
        %s287 = scalar_lea.vmem %s4, %s286
        %v288 = vld [vmem:[%s271] sm:$0xff]
        %v289 = vld [vmem:[%s275] sm:$0xff]
        %v290 = vld [vmem:[%s279] sm:$0xff]
        %v291 = vld [vmem:[%s283] sm:$0xff]
        %v292 = vld [vmem:[%s287] sm:$0xff]
        %294 = vrot.lane.b32.xlu0 %v289, 16
        %v295 = vpop.permute.xlu0 %294
        %298 = vrot.lane.b32.xlu0 %v290, 24
        %v299 = vpop.permute.xlu0 %298
        %302 = vrot.lane.b32.xlu0 %v291, 40
        %v303 = vpop.permute.xlu0 %302
        %306 = vrot.lane.b32.xlu0 %v292, 56
        %v307 = vpop.permute.xlu0 %306
        %vm309 = vcmask 130048
        %v310 = vsel %vm309, %v288, %v295
        %vm311 = vcmask 195584
        %v312 = vsel %vm311, %v310, %v299
        %vm313 = vcmask 326656
        %v314 = vsel %vm313, %v312, %v303
        %vm315 = vcmask 457728
        %v316 = vsel %vm315, %v314, %v307
        %vm317 = vcmask 719872
        %318 = vst.msk [vmem:[%s267] sm:$0xff] %vm317, %v316
        %s319 = sand.u32 %s157, 1
        %s320 = scalar_lea.sflag [#allocation3], %s319
        %s321 = sand.u32 %s157, 1
        %s322 = smul.addr %s321, 8
        %s323 = scalar_lea.vmem [#allocation2], %s322
        // Predicated region
        $region41: #{tpu_custom_call.1} parent=39 // pred_check
          %p324 = pneg %p167
        $region42: #{tpu_custom_call.1} parent=39 // pred_check_branch
          %326 = sbr.rel (%p324) target = $region44
        $region43: #{tpu_custom_call.1} parent=39 // pred_region
          %s328 = ssub.s32 128, 128
          %329 = vsyncadd %s320, %s328
          %s330 = smul.addr %s19, 128
          %s331 = scalar_lea.hbm %s5, %s330
          %s333 = sshll.u32 %s323, 4
          %s334 = int_to_ptr.vmem [resolvable:$true] %s333
          %336 = dma.vmem_to_hbm [thread:$0]  %s334, 128, %s331, %s320
        $region44: #{tpu_custom_call.1} parent=39 // pred_fallthru
          _
      $region40: #{tpu_custom_call.1} parent=5 // pred_fallthru
        _
      %p337 = scmp.le.s32.totalorder 2, %s14
      // Predicated region
      $region45: #{tpu_custom_call.1} parent=5 // pred_check
        %p338 = pneg %p337
      $region46: #{tpu_custom_call.1} parent=5 // pred_check_branch
        %340 = sbr.rel (%p338) target = $region48
      $region47: #{tpu_custom_call.1} parent=5 // pred_region
        %s341 = ssub.s32 %s14, 2
        // Predicated region
        $region49: #{tpu_custom_call.1} parent=47 // pred_check
          %p342 = pneg %p173
        $region50: #{tpu_custom_call.1} parent=47 // pred_check_branch
          %344 = sbr.rel (%p342) target = $region52
        $region51: #{tpu_custom_call.1} parent=47 // pred_region
          %s345 = sand.u32 %s158, 1
          %s346 = scalar_lea.sflag [#allocation3], %s345
          %s347 = sand.u32 %s158, 1
          %s348 = smul.addr %s347, 8
          %s349 = scalar_lea.vmem [#allocation2], %s348
          %350 = dma.done %s346, 128
        $region52: #{tpu_custom_call.1} parent=47 // pred_fallthru
          _
      $region48: #{tpu_custom_call.1} parent=5 // pred_fallthru
        _
    $region6: #{tpu_custom_call.1} parent=1 // loop_footer
      %s18 = sadd.s32 1, %s14
    $region7: #{tpu_custom_call.1} parent=1 // loop_footer_branch
      %13 = sbr.rel target = $region3
    $region8: #{tpu_custom_call.1} parent=1 // loop_exit
      _
    %351 = vsyncpa [#allocation3], 1
    %s352 = scalar_lea.sflag [#allocation3], 1
    %353 = vsyncpa %s352, 1

</llo_original>
